<compile_context>
chip_gen: v7x
topology: tpu7x:2x2x1
jax: 0.10.0
libtpu: 0.0.40
codegen_flags: <defaults>
</compile_context>

<pallas_src>
import jax
import jax.numpy as jnp
from jax.experimental import pallas as pl
from jax.experimental.pallas import tpu as pltpu

EPS = 1e-5  # PyTorch BatchNorm1d default eps


def _round_up(n, m):
    return ((n + m - 1) // m) * m


def _eegnet_kernel(x_ref, w1_ref, b1_ref, w2_ref, b2_ref, w3_ref, b3_ref, o_ref):
    """Transposed layout: batch rides the 128-lane axis.

    x_ref  : (F,  TILE_B)  bf16   (streamed per grid step)
    w1_ref : (16, F)  bf16        b1_ref : (16, 1) f32   (BN1 folded in)
    w2_ref : (8, 16)  bf16        b2_ref : (8, 1)  f32   (BN2 folded in)
    w3_ref : (8, 1)   f32         b3_ref : (1, 1)  f32
    o_ref  : (1, TILE_B) f32      (lane-dense output tile)
    """
    # fc1 + (folded) bn1 + relu   -- bf16 MXU matmul, f32 accumulation
    h = jnp.dot(w1_ref[...], x_ref[...], preferred_element_type=jnp.float32)
    h = jnp.maximum(h + b1_ref[...], 0.0)
    # dropout (eval) -> identity
    h = h.astype(jnp.bfloat16)  # halve the largest live intermediate (VMEM)

    # fc2 + (folded) bn2 + relu
    h = jnp.dot(w2_ref[...], h, preferred_element_type=jnp.float32)
    h = jnp.maximum(h + b2_ref[...], 0.0)
    # dropout (eval) -> identity

    # fc3 + sigmoid: (1,8)@(8,TILE_B) would be <0.1% MXU utilization; do it as
    # a broadcast-multiply + sublane reduce (VPU/XLU) to avoid a third
    # dependent MXU push/drain per tile.
    z = jnp.sum(w3_ref[...] * h, axis=0, keepdims=True) + b3_ref[...]
    o_ref[...] = jax.nn.sigmoid(z)


def _fold_bn(w, b, g, be, rm, rv):
    """Fold eval-mode BatchNorm1d into a preceding Linear (PyTorch layout)."""
    scale = g * jax.lax.rsqrt(rv + EPS)          # (C_out,)
    w_f = w * scale[:, None]                      # (C_out, C_in)
    b_f = (b - rm) * scale + be                   # (C_out,)
    return w_f, b_f


def _eegnet_jnp(x, w1f, b1f, w2f, b2f, w3, b3):
    """Plain-XLA path for tiny batches (B << 128)."""
    h = jnp.maximum(x @ w1f.T + b1f, 0.0)
    h = jnp.maximum(h @ w2f.T + b2f, 0.0)
    return jax.nn.sigmoid(h @ w3.T + b3)


def eegnet_forward(x, params, *, max_tile_b=65536, force_pallas=False):
    """x: (B, F) float32.  params: PyTorch-layout weights + BN running stats."""
    B, F = x.shape

    # ---- host-side BN folding (15 -> 7 kernel inputs) ----------------------
    w1f, b1f = _fold_bn(params["w1"], params["b1"], params["g1"], params["be1"],
                        params["rm1"], params["rv1"])
    w2f, b2f = _fold_bn(params["w2"], params["b2"], params["g2"], params["be2"],
                        params["rm2"], params["rv2"])
    w3, b3 = params["w3"], params["b3"]

    if B < 128 and not force_pallas:
        # Pallas cannot be fast when data fills <128 lanes: the whole call is
        # launch + fixed pipeline overhead.  Plain XLA is the right tool here.
        return _eegnet_jnp(x, w1f, b1f, w2f, b2f, w3, b3)

    H1, H2 = w1f.shape[0], w2f.shape[0]           # 16, 8

    # ---- tiling: largest tiles that fit VMEM, minimal padding waste --------
    n_tiles = max(1, pl.cdiv(B, max_tile_b))
    if n_tiles > 1 and n_tiles % 2:
        n_tiles += 1          # even grid -> both TensorCores busy on v7x megacore
    tile_b = _round_up(pl.cdiv(B, n_tiles), 128)  # waste <= ~128 samples / tile
    b_pad = n_tiles * tile_b

    # ---- transpose + pad + bf16 cast (fuses into one XLA pass under jit) ---
    # Ideally the producer would already emit x as (F, B) bf16 so this
    # prologue (an extra HBM read+write of x) disappears entirely.
    xt = jnp.pad(x.T.astype(jnp.bfloat16), ((0, 0), (0, b_pad - B)))  # (F, B_pad)

    cost = pl.CostEstimate(
        flops=2 * b_pad * (F * H1 + H1 * H2 + H2),
        transcendentals=b_pad,                    # sigmoid
        bytes_accessed=(2 * F * b_pad + 4 * b_pad
                        + 4 * (w1f.size + b1f.size + w2f.size + b2f.size
                               + w3.size + b3.size)),
    )

    # VMEM footprint upper bound per grid step: x double-buffered (bf16) +
    # f32/bf16 intermediates + f32 out double-buffered + weights/headroom.
    vmem_est = (2 * F * tile_b * 2            # x, 2 buffers, bf16
                + (H1 + H2) * tile_b * 6      # h1/h2 f32 + bf16 copies
                + 2 * tile_b * 4              # out, 2 buffers, f32
                + (1 << 20))                  # weights + slack
    vmem_limit = min(48 << 20, max(32 << 20, vmem_est))  # <=48 MiB: safe on v7x

    out = pl.pallas_call(
        _eegnet_kernel,
        out_shape=jax.ShapeDtypeStruct((1, b_pad), jnp.float32),
        grid=(n_tiles,),
        in_specs=[
            pl.BlockSpec((F, tile_b), lambda i: (0, i)),   # x tile, streamed
            pl.BlockSpec((H1, F), lambda i: (0, 0)),       # weights/biases stay
            pl.BlockSpec((H1, 1), lambda i: (0, 0)),       # VMEM-resident
            pl.BlockSpec((H2, H1), lambda i: (0, 0)),      # (constant block
            pl.BlockSpec((H2, 1), lambda i: (0, 0)),       #  index -> no
            pl.BlockSpec((H2, 1), lambda i: (0, 0)),       #  re-DMA per step)
            pl.BlockSpec((1, 1), lambda i: (0, 0)),
        ],
        out_specs=pl.BlockSpec((1, tile_b), lambda i: (0, i)),  # lane-dense out
        compiler_params=pltpu.CompilerParams(
            dimension_semantics=("parallel",),
            vmem_limit_bytes=vmem_limit,
        ),
        cost_estimate=cost,
    )(xt,
      w1f.astype(jnp.bfloat16), b1f[:, None],
      w2f.astype(jnp.bfloat16), b2f[:, None],
      w3.T, b3[:, None])

    return out[:, :B].T                            # (B, 1), PyTorch parity


def init_params(key, input_size):
    """Deterministic synthetic parameters matching EEGNet(input_size) shapes."""
    ks = jax.random.split(key, 10)

    def lin(kw, kb, fan_in, fan_out):
        bound = 1.0 / jnp.sqrt(fan_in)
        w = jax.random.uniform(kw, (fan_out, fan_in), jnp.float32, -bound, bound)
        b = jax.random.uniform(kb, (fan_out,), jnp.float32, -bound, bound)
        return w, b

    w1, b1 = lin(ks[0], ks[1], input_size, 16)
    w2, b2 = lin(ks[2], ks[3], 16, 8)
    w3, b3 = lin(ks[4], ks[5], 8, 1)

    def bn(kg, kb, c):
        g = 1.0 + 0.1 * jax.random.normal(kg, (c,), jnp.float32)
        be = 0.1 * jax.random.normal(kb, (c,), jnp.float32)
        rm = 0.05 * jax.random.normal(jax.random.fold_in(kg, 7), (c,), jnp.float32)
        rv = 1.0 + 0.1 * jax.random.uniform(jax.random.fold_in(kb, 7), (c,), jnp.float32)
        return g, be, rm, rv

    g1, be1, rm1, rv1 = bn(ks[6], ks[7], 16)
    g2, be2, rm2, rv2 = bn(ks[8], ks[9], 8)

    return dict(
        w1=w1, b1=b1, g1=g1, be1=be1, rm1=rm1, rv1=rv1,
        w2=w2, b2=b2, g2=g2, be2=be2, rm2=rm2, rv2=rv2,
        w3=w3, b3=b3,
    )


def eegnet_reference(x, p):
    """Pure-JAX f32 reference matching the PyTorch module in eval mode."""
    h = x @ p["w1"].T + p["b1"]
    h = (h - p["rm1"]) / jnp.sqrt(p["rv1"] + EPS) * p["g1"] + p["be1"]
    h = jnp.maximum(h, 0.0)
    h = h @ p["w2"].T + p["b2"]
    h = (h - p["rm2"]) / jnp.sqrt(p["rv2"] + EPS) * p["g2"] + p["be2"]
    h = jnp.maximum(h, 0.0)
    z = h @ p["w3"].T + p["b3"]
    return jax.nn.sigmoid(z)


if __name__ == "__main__":
    key = jax.random.PRNGKey(0)
    k_x, k_p = jax.random.split(key)

    input_size = 8  # extract_features() produces 8 features per sample
    params = init_params(k_p, input_size)

    fwd = jax.jit(eegnet_forward, static_argnames=("max_tile_b", "force_pallas"))

    # 1) Tiny batch (smoke test): force the Pallas path so the kernel runs.
    batch = 8
    x_small = jax.random.normal(k_x, (batch, input_size), jnp.float32)
    out_small = jax.block_until_ready(fwd(x_small, params, force_pallas=True))
    ref_small = eegnet_reference(x_small, params)
    assert out_small.shape == (batch, 1), out_small.shape
    # bf16 streaming of x / weights -> tolerance relaxed vs. the f32 reference.
    assert jnp.allclose(out_small, ref_small, atol=2e-2, rtol=0.0), (
        float(jnp.max(jnp.abs(out_small - ref_small))))

    # 2) Multi-tile path: exercises grid > 1, even-grid rounding and padding.
    x_big = jax.random.normal(jax.random.fold_in(k_x, 1), (300, input_size),
                              jnp.float32)
    out_big = jax.block_until_ready(fwd(x_big, params, max_tile_b=128))
    ref_big = eegnet_reference(x_big, params)
    assert out_big.shape == (300, 1), out_big.shape
    assert jnp.allclose(out_big, ref_big, atol=2e-2, rtol=0.0), (
        float(jnp.max(jnp.abs(out_big - ref_big))))

    print("KERNEL_OK")
</pallas_src>

<mosaic_0001>
module attributes {stable_mosaic.version = 11 : i64} {
  func.func @_eegnet_kernel(%arg0: i32, %arg1: memref<8x128xbf16, #tpu.memory_space<vmem>>, %arg2: memref<16x8xbf16, #tpu.memory_space<vmem>>, %arg3: memref<16x1xf32, #tpu.memory_space<vmem>>, %arg4: memref<8x16xbf16, #tpu.memory_space<vmem>>, %arg5: memref<8x1xf32, #tpu.memory_space<vmem>>, %arg6: memref<8x1xf32, #tpu.memory_space<vmem>>, %arg7: memref<1x1xf32, #tpu.memory_space<vmem>>, %arg8: memref<1x128xf32, #tpu.memory_space<vmem>>) attributes {dimension_semantics = [#tpu.dimension_semantics<parallel>], iteration_bounds = array<i64: 1>, scalar_prefetch = 0 : i64, scratch_operands = 0 : i64, tpu.core_type = #tpu.core_type<tc>, window_params = [{transform_indices = @transform_0, window_bounds = array<i64: 8, 128>}, {pipeline_mode = #tpu.pipeline_mode<synchronous>, transform_indices = @transform_1, window_bounds = array<i64: 16, 8>}, {pipeline_mode = #tpu.pipeline_mode<synchronous>, transform_indices = @transform_2, window_bounds = array<i64: 16, 1>}, {pipeline_mode = #tpu.pipeline_mode<synchronous>, transform_indices = @transform_3, window_bounds = array<i64: 8, 16>}, {pipeline_mode = #tpu.pipeline_mode<synchronous>, transform_indices = @transform_4, window_bounds = array<i64: 8, 1>}, {pipeline_mode = #tpu.pipeline_mode<synchronous>, transform_indices = @transform_5, window_bounds = array<i64: 8, 1>}, {pipeline_mode = #tpu.pipeline_mode<synchronous>, transform_indices = @transform_6, window_bounds = array<i64: 1, 1>}, {transform_indices = @transform_7, window_bounds = array<i64: 1, 128>}]} {
    %c0 = arith.constant 0 : index
    %c0_0 = arith.constant 0 : index
    %0 = vector.load %arg2[%c0, %c0_0] : memref<16x8xbf16, #tpu.memory_space<vmem>>, vector<16x8xbf16>
    %c0_1 = arith.constant 0 : index
    %c0_2 = arith.constant 0 : index
    %1 = vector.load %arg1[%c0_1, %c0_2] : memref<8x128xbf16, #tpu.memory_space<vmem>>, vector<8x128xbf16>
    %cst = arith.constant dense<0.000000e+00> : vector<16x128xf32>
    %2 = tpu.matmul %0, %1, %cst {dimension_numbers = #tpu.dot_dimension_numbers<[1], [0], [0], [1], [0, 0, 1, 1], [], []>} : vector<16x8xbf16>, vector<8x128xbf16>, vector<16x128xf32> -> vector<16x128xf32>
    %c0_3 = arith.constant 0 : index
    %c0_4 = arith.constant 0 : index
    %3 = vector.load %arg3[%c0_3, %c0_4] : memref<16x1xf32, #tpu.memory_space<vmem>>, vector<16x1xf32>
    %4 = vector.broadcast %3 : vector<16x1xf32> to vector<16x128xf32>
    %5 = arith.addf %2, %4 : vector<16x128xf32>
    %cst_5 = arith.constant 0.000000e+00 : f32
    %6 = vector.broadcast %cst_5 : f32 to vector<16x128xf32>
    %7 = arith.maximumf %5, %6 : vector<16x128xf32>
    %8 = arith.truncf %7 : vector<16x128xf32> to vector<16x128xbf16>
    %c0_6 = arith.constant 0 : index
    %c0_7 = arith.constant 0 : index
    %9 = vector.load %arg4[%c0_6, %c0_7] : memref<8x16xbf16, #tpu.memory_space<vmem>>, vector<8x16xbf16>
    %cst_8 = arith.constant dense<0.000000e+00> : vector<8x128xf32>
    %10 = tpu.matmul %9, %8, %cst_8 {dimension_numbers = #tpu.dot_dimension_numbers<[1], [0], [0], [1], [0, 0, 1, 1], [], []>} : vector<8x16xbf16>, vector<16x128xbf16>, vector<8x128xf32> -> vector<8x128xf32>
    %c0_9 = arith.constant 0 : index
    %c0_10 = arith.constant 0 : index
    %11 = vector.load %arg5[%c0_9, %c0_10] : memref<8x1xf32, #tpu.memory_space<vmem>>, vector<8x1xf32>
    %12 = vector.broadcast %11 : vector<8x1xf32> to vector<8x128xf32>
    %13 = arith.addf %10, %12 : vector<8x128xf32>
    %cst_11 = arith.constant 0.000000e+00 : f32
    %14 = vector.broadcast %cst_11 : f32 to vector<8x128xf32>
    %15 = arith.maximumf %13, %14 : vector<8x128xf32>
    %c0_12 = arith.constant 0 : index
    %c0_13 = arith.constant 0 : index
    %16 = vector.load %arg6[%c0_12, %c0_13] : memref<8x1xf32, #tpu.memory_space<vmem>>, vector<8x1xf32>
    %17 = vector.broadcast %16 : vector<8x1xf32> to vector<8x128xf32>
    %18 = arith.mulf %17, %15 : vector<8x128xf32>
    %cst_14 = arith.constant dense<0.000000e+00> : vector<128xf32>
    %19 = vector.multi_reduction <add>, %18, %cst_14 [0] : vector<8x128xf32> to vector<128xf32>
    %20 = vector.shape_cast %19 : vector<128xf32> to vector<1x128xf32>
    %c0_15 = arith.constant 0 : index
    %c0_16 = arith.constant 0 : index
    %21 = vector.load %arg7[%c0_15, %c0_16] : memref<1x1xf32, #tpu.memory_space<vmem>>, vector<1x1xf32>
    %22 = vector.broadcast %21 : vector<1x1xf32> to vector<1x128xf32>
    %23 = arith.addf %20, %22 : vector<1x128xf32>
    %24 = arith.negf %23 : vector<1x128xf32>
    %25 = math.exp %24 : vector<1x128xf32>
    %cst_17 = arith.constant 1.000000e+00 : f32
    %26 = vector.broadcast %cst_17 : f32 to vector<1x128xf32>
    %27 = arith.addf %26, %25 : vector<1x128xf32>
    %28 = arith.divf %26, %27 : vector<1x128xf32>
    %c0_18 = arith.constant 0 : index
    %c0_19 = arith.constant 0 : index
    %29 = vector.load %arg8[%c0_18, %c0_19] : memref<1x128xf32, #tpu.memory_space<vmem>>, vector<1x128xf32>
    tpu.vector_store %arg8[%c0_18, %c0_19], %28 {strides = array<i32>} : memref<1x128xf32, #tpu.memory_space<vmem>>, vector<1x128xf32>,
    return
  }
  func.func @transform_0(%arg0: i32) -> (i32, i32) {
    %c0_i32 = arith.constant 0 : i32
    %c0_i32_0 = arith.constant 0 : i32
    return %c0_i32, %arg0 : i32, i32
  }
  func.func @transform_1(%arg0: i32) -> (i32, i32) {
    %c0_i32 = arith.constant 0 : i32
    %c0_i32_0 = arith.constant 0 : i32
    %c0_i32_1 = arith.constant 0 : i32
    return %c0_i32, %c0_i32_0 : i32, i32
  }
  func.func @transform_2(%arg0: i32) -> (i32, i32) {
    %c0_i32 = arith.constant 0 : i32
    %c0_i32_0 = arith.constant 0 : i32
    %c0_i32_1 = arith.constant 0 : i32
    return %c0_i32, %c0_i32_0 : i32, i32
  }
  func.func @transform_3(%arg0: i32) -> (i32, i32) {
    %c0_i32 = arith.constant 0 : i32
    %c0_i32_0 = arith.constant 0 : i32
    %c0_i32_1 = arith.constant 0 : i32
    return %c0_i32, %c0_i32_0 : i32, i32
  }
  func.func @transform_4(%arg0: i32) -> (i32, i32) {
    %c0_i32 = arith.constant 0 : i32
    %c0_i32_0 = arith.constant 0 : i32
    %c0_i32_1 = arith.constant 0 : i32
    return %c0_i32, %c0_i32_0 : i32, i32
  }
  func.func @transform_5(%arg0: i32) -> (i32, i32) {
    %c0_i32 = arith.constant 0 : i32
    %c0_i32_0 = arith.constant 0 : i32
    %c0_i32_1 = arith.constant 0 : i32
    return %c0_i32, %c0_i32_0 : i32, i32
  }
  func.func @transform_6(%arg0: i32) -> (i32, i32) {
    %c0_i32 = arith.constant 0 : i32
    %c0_i32_0 = arith.constant 0 : i32
    %c0_i32_1 = arith.constant 0 : i32
    return %c0_i32, %c0_i32_0 : i32, i32
  }
  func.func @transform_7(%arg0: i32) -> (i32, i32) {
    %c0_i32 = arith.constant 0 : i32
    %c0_i32_0 = arith.constant 0 : i32
    return %c0_i32, %arg0 : i32, i32
  }
}

</mosaic_0001>

<llo_original>
// kernel: eegnet_forward.1
$region0: #{eegnet_forward.1}
  #allocation0 [shape = 'u32[]', space=smem, size = 0x4, offset = 0x4, fixed_abs, tag = 'smem constant byte address 0x4 - core index']
  #allocation1 [shape = 'u32[144,128]{1,0:T(1,128)}', space=vmem, size = 0x12000, scoped, tag = 'internal scratch']
  #allocation2 [shape = 'f32[1,1]{1,0:T(1,128)S(1)}', space=vmem, size = 0x200, scoped, tag = 'scoped memory for eegnet_forward.1']
  %s0 = inlined_call_operand.vmem [shape: bf16[8,128], index: 0, kind: input, shape index: {}]
  %s1 = inlined_call_operand.vmem [shape: bf16[16,8], index: 1, kind: input, shape index: {}]
  %s2 = inlined_call_operand.vmem [shape: f32[16,1], index: 2, kind: input, shape index: {}]
  %s3 = inlined_call_operand.vmem [shape: bf16[8,16], index: 3, kind: input, shape index: {}]
  %s4 = inlined_call_operand.vmem [shape: f32[8,1], index: 4, kind: input, shape index: {}]
  %s5 = inlined_call_operand.vmem [shape: f32[8,1], index: 5, kind: input, shape index: {}]
  %s6 = inlined_call_operand.<no memory space> [shape: f32[1,1], index: 6, kind: input, shape index: {}]
  %s7 = inlined_call_operand.vmem [shape: f32[1,128], index: 7, kind: output, shape index: {}]
  %s8 = sld [smem:[#allocation0]]
  $region38: #{eegnet_forward.1} parent=0
    _
  %s10 = ssub.s32 1, %s8
  %s11 = scalar_select 0, %s10, %s8
  %v12 = vstv %s6
  %13 = vst [vmem:[#allocation2] sm:$0x1] %v12
  // Predicated region
  $region2: #{eegnet_forward.1} parent=0 // pred_check
    _
  $region3: #{eegnet_forward.1} parent=0 // pred_check_branch
    %15 = sbr.rel (0) target = $region5
  $region4: #{eegnet_forward.1} parent=0 // pred_region
    _
  $region5: #{eegnet_forward.1} parent=0 // pred_fallthru
    _
  // Predicated region
  $region6: #{eegnet_forward.1} parent=0 // pred_check
    _
  $region7: #{eegnet_forward.1} parent=0 // pred_check_branch
    %17 = sbr.rel (0) target = $region9
  $region8: #{eegnet_forward.1} parent=0 // pred_region
    _
  $region9: #{eegnet_forward.1} parent=0 // pred_fallthru
    _
  // Predicated region
  $region10: #{eegnet_forward.1} parent=0 // pred_check
    _
  $region11: #{eegnet_forward.1} parent=0 // pred_check_branch
    %19 = sbr.rel (0) target = $region13
  $region12: #{eegnet_forward.1} parent=0 // pred_region
    _
  $region13: #{eegnet_forward.1} parent=0 // pred_fallthru
    _
  // Predicated region
  $region14: #{eegnet_forward.1} parent=0 // pred_check
    _
  $region15: #{eegnet_forward.1} parent=0 // pred_check_branch
    %21 = sbr.rel (0) target = $region17
  $region16: #{eegnet_forward.1} parent=0 // pred_region
    _
  $region17: #{eegnet_forward.1} parent=0 // pred_fallthru
    _
  // Predicated region
  $region18: #{eegnet_forward.1} parent=0 // pred_check
    _
  $region19: #{eegnet_forward.1} parent=0 // pred_check_branch
    %23 = sbr.rel (0) target = $region21
  $region20: #{eegnet_forward.1} parent=0 // pred_region
    _
  $region21: #{eegnet_forward.1} parent=0 // pred_fallthru
    _
  // Predicated region
  $region22: #{eegnet_forward.1} parent=0 // pred_check
    _
  $region23: #{eegnet_forward.1} parent=0 // pred_check_branch
    %25 = sbr.rel (0) target = $region25
  $region24: #{eegnet_forward.1} parent=0 // pred_region
    _
  $region25: #{eegnet_forward.1} parent=0 // pred_fallthru
    _
  // Predicated region
  $region26: #{eegnet_forward.1} parent=0 // pred_check
    _
  $region27: #{eegnet_forward.1} parent=0 // pred_check_branch
    %27 = sbr.rel (0) target = $region29
  $region28: #{eegnet_forward.1} parent=0 // pred_region
    _
  $region29: #{eegnet_forward.1} parent=0 // pred_fallthru
    _
  %v29 = vld [vmem:[%s1] sm:$0xf]
  %v30 = vld [vmem:[%s1 + $0x4] sm:$0xf]
  %v31 = vld [vmem:[%s0] sm:$0xf]
  %v32 = vld [vmem:[%s2] sm:$0xff]
  %v33 = vld [vmem:[%s2 + $0x8] sm:$0xff]
  %35 = vset.pattern.permute.xlu0 0
  %36 = vperm.xlu0 %35, %v32
  %v37 = vpop.permute.xlu0 %36
  %40 = vset.pattern.permute.xlu0 0
  %41 = vperm.xlu0 %40, %v33
  %v42 = vpop.permute.xlu0 %41
  %v46 = vunpack.c.l.b16 %v29
  %v47 = vunpack.c.l.b16 %v30
  %v48 = vpack.c.b16 %v47, %v46
  %vm49 = vcmask 64512
  %v51 = vsel %vm49, %v48, 0
  %vm53 = vcmask 1043456
  %v55 = vsel %vm53, %v31, 0
  %57 = vmatprep.subr.bf16.mxu0 0
  %58 = vmatpush1.bf16.msra.mxu0 %v55
  %59 = vmatprep.subr.bf16.mxu0 0
  %60 = vmatpush1.bf16.msra.mxu0 0
  %61 = vmatprep.subr.bf16.mxu0 0
  %62 = vmatpush1.bf16.msra.mxu0 0
  %63 = vmatprep.subr.bf16.mxu0 0
  %64 = vmatpush1.bf16.msra.mxu0 0
  %65 = vmatprep.subr.bf16.mxu0 0
  %66 = vmatpush1.bf16.msra.mxu0 0
  %67 = vmatprep.subr.bf16.mxu0 0
  %68 = vmatpush1.bf16.msra.mxu0 0
  %69 = vmatprep.subr.bf16.mxu0 0
  %70 = vmatpush1.bf16.msra.mxu0 0
  %71 = vmatprep.subr.bf16.mxu0 0
  %72 = vmatpush1.bf16.msra.mxu0 0
  %73 = vmatprep.subr.bf16.mxu0 0
  %74 = vmatpush1.bf16.msra.mxu0 0
  %75 = vmatprep.subr.bf16.mxu0 0
  %76 = vmatpush1.bf16.msra.mxu0 0
  %77 = vmatprep.subr.bf16.mxu0 0
  %78 = vmatpush1.bf16.msra.mxu0 0
  %79 = vmatprep.subr.bf16.mxu0 0
  %80 = vmatpush1.bf16.msra.mxu0 0
  %81 = vmatprep.subr.bf16.mxu0 0
  %82 = vmatpush1.bf16.msra.mxu0 0
  %83 = vmatprep.subr.bf16.mxu0 0
  %84 = vmatpush1.bf16.msra.mxu0 0
  %85 = vmatprep.subr.bf16.mxu0 0
  %86 = vmatpush1.bf16.msra.mxu0 0
  %87 = vmatprep.subr.bf16.mxu0 0
  %88 = vmatpush1.bf16.msra.mxu0 0
  %89 = vmatprep.mubr.bf16.mxu0 0
  %90 = vmatmul.mubr.bf16.gmra.mrb[0].mxu0 %v51
  %v91 = vpop.f32.mrb[0].mxu0
  %v92 = vadd.f32 %v37, %v91
  %v93 = vpop.f32.mrb[0].mxu0
  %v94 = vpop.f32.mrb[0].mxu0
  %v95 = vadd.f32 %v42, %v94
  %v96 = vpop.f32.mrb[0].mxu0
  %97 = vdwg.mxu0
  %v98 = vmax.f32 %v92, 0.0
  %v99 = vmax.f32 %v95, 0.0
  %v100 = vpack.c.bf16 %v99, %v98
  %v101 = vld [vmem:[%s3] sm:$0xf]
  %v102 = vld [vmem:[%s4] sm:$0xff]
  %104 = vset.pattern.permute.xlu0 0
  %105 = vperm.xlu0 %104, %v102
  %v106 = vpop.permute.xlu0 %105
  %vm108 = vcmask 130048
  %v110 = vsel %vm108, %v101, 0
  %112 = vmatprep.subr.bf16.mxu0 0
  %113 = vmatpush1.bf16.msra.mxu0 %v100
  %114 = vmatprep.subr.bf16.mxu0 0
  %115 = vmatpush1.bf16.msra.mxu0 0
  %116 = vmatprep.subr.bf16.mxu0 0
  %117 = vmatpush1.bf16.msra.mxu0 0
  %118 = vmatprep.subr.bf16.mxu0 0
  %119 = vmatpush1.bf16.msra.mxu0 0
  %120 = vmatprep.subr.bf16.mxu0 0
  %121 = vmatpush1.bf16.msra.mxu0 0
  %122 = vmatprep.subr.bf16.mxu0 0
  %123 = vmatpush1.bf16.msra.mxu0 0
  %124 = vmatprep.subr.bf16.mxu0 0
  %125 = vmatpush1.bf16.msra.mxu0 0
  %126 = vmatprep.subr.bf16.mxu0 0
  %127 = vmatpush1.bf16.msra.mxu0 0
  %128 = vmatprep.subr.bf16.mxu0 0
  %129 = vmatpush1.bf16.msra.mxu0 0
  %130 = vmatprep.subr.bf16.mxu0 0
  %131 = vmatpush1.bf16.msra.mxu0 0
  %132 = vmatprep.subr.bf16.mxu0 0
  %133 = vmatpush1.bf16.msra.mxu0 0
  %134 = vmatprep.subr.bf16.mxu0 0
  %135 = vmatpush1.bf16.msra.mxu0 0
  %136 = vmatprep.subr.bf16.mxu0 0
  %137 = vmatpush1.bf16.msra.mxu0 0
  %138 = vmatprep.subr.bf16.mxu0 0
  %139 = vmatpush1.bf16.msra.mxu0 0
  %140 = vmatprep.subr.bf16.mxu0 0
  %141 = vmatpush1.bf16.msra.mxu0 0
  %142 = vmatprep.subr.bf16.mxu0 0
  %143 = vmatpush1.bf16.msra.mxu0 0
  %144 = vmatprep.mubr.bf16.mxu0 0
  %145 = vmatmul.mubr.bf16.gmra.mrb[0].mxu0 %v110
  %v146 = vpop.f32.mrb[0].mxu0
  %v147 = vadd.f32 %v106, %v146
  %v148 = vpop.f32.mrb[0].mxu0
  %v149 = vpop.f32.mrb[0].mxu0
  %v150 = vpop.f32.mrb[0].mxu0
  %151 = vdwg.mxu0
  %v152 = vmax.f32 %v147, 0.0
  %v153 = vld [vmem:[%s5] sm:$0xff]
  %155 = vset.pattern.permute.xlu0 0
  %156 = vperm.xlu0 %155, %v153
  %v157 = vpop.permute.xlu0 %156
  %v159 = vmul.f32 %v157, %v152
  %v160 = vrot.slane %v159, 4
  %v161 = vadd.f32 %v159, %v160
  %v162 = vrot.slane %v161, 2
  %v163 = vadd.f32 %v161, %v162
  %v164 = vrot.slane %v163, 1
  %v165 = vadd.f32 %v163, %v164
  %v166 = vld [vmem:[#allocation2] sm:$0x1]
  %168 = vset.pattern.permute.xlu0 0
  %169 = vperm.xlu0 %168, %v166
  %v170 = vpop.permute.xlu0 %169
  %v172 = vlaneseq
  %v173 = vshrl.u32 %v172, 7
  %v174 = vsub.s32 0, %v173
  %v175 = vrot.slane %v170, %v174
  %v176 = vadd.f32 %v165, %v175
  %v177 = vxor.u32 %v176, 2147483648
  %v178 = vmul.f32 %v177, 1.442695
  %v179 = vpow.pop %v178
  %v180 = vadd.f32 %v179, 1.0
  %v181 = vrcp.pop %v180
  %v182 = vmul.f32 1.0, %v181
  %183 = vst [vmem:[%s7] sm:$0x1] %v182
  // Predicated region
  $region30: #{eegnet_forward.1} parent=0 // pred_check
    _
  $region31: #{eegnet_forward.1} parent=0 // pred_check_branch
    %185 = sbr.rel (0) target = $region33
  $region32: #{eegnet_forward.1} parent=0 // pred_region
    _
  $region33: #{eegnet_forward.1} parent=0 // pred_fallthru
    _
  // Predicated region
  $region34: #{eegnet_forward.1} parent=0 // pred_check
    _
  $region35: #{eegnet_forward.1} parent=0 // pred_check_branch
    %187 = sbr.rel (0) target = $region37
  $region36: #{eegnet_forward.1} parent=0 // pred_region
    _
  $region37: #{eegnet_forward.1} parent=0 // pred_fallthru
    _

</llo_original>
